<compile_context>
chip_gen: v7x
topology: tpu7x:2x2x1
jax: 0.10.0
libtpu: 0.0.40
codegen_flags: <defaults>
</compile_context>

<pallas_src>
import math

import jax
import jax.numpy as jnp
from jax import lax
from jax.experimental import pallas as pl
from jax.experimental.pallas import tpu as pltpu

_EPS = 1e-12           # F.normalize default eps
_EPS_SQ = _EPS * _EPS  # clamp sum-of-squares at eps^2 (normal f32, 1e-24)


def _round_up(v, m):
    return ((v + m - 1) // m) * m


def _cdiv(a, b):
    return (a + b - 1) // b


def _vmem_capacity_bytes(default=64 * 1024 * 1024):
    """Best-effort VMEM capacity query; conservative (v7x-safe) fallback."""
    try:
        info = pltpu.get_tpu_info()
        cap = getattr(info, "vmem_capacity_bytes", None)
        if cap:
            return int(cap)
    except Exception:
        pass
    return default


# --------------------------------------------------------------------------
# Kernel: pure per grid point — normalize x rows (f32, rsqrt on the EUP),
# fold sigma into the row scale, NN matmul against the pre-normalized,
# pre-transposed weight tile.  No scratch, no cross-step state.
# --------------------------------------------------------------------------
def _split_cosine_kernel(x_ref, w_ref, sigma_ref, o_ref):
    # x_ref: (TM, D), w_ref: (D, TN) pre-normalized columns (mxu dtype),
    # sigma_ref: (1, 1) SMEM, o_ref: (TM, TN).
    x = x_ref[...].astype(jnp.float32)
    x_inv = lax.rsqrt(jnp.maximum(jnp.sum(x * x, axis=1, keepdims=True),
                                  _EPS_SQ)) * sigma_ref[0, 0]
    xn = (x * x_inv).astype(w_ref.dtype)
    out = jnp.dot(xn, w_ref[...], preferred_element_type=jnp.float32)
    o_ref[...] = out.astype(o_ref.dtype)


# --------------------------------------------------------------------------
# One-time parameter preparation (module-construction time, NOT per call).
# --------------------------------------------------------------------------
def prepare_split_cosine_params(w1, w2, sigma, *, mxu_dtype=jnp.bfloat16,
                                tn_max=2048, tm_max=256,
                                vmem_budget_bytes=None,
                                vmem_limit_bytes=None):
    """Stack fc1/fc2 weights, row-normalize in f32, zero-pad the output dim to
    a lane-dense multiple of 128, transpose to (D, O_pad), cast to mxu_dtype,
    and pick generation-aware tile sizes."""
    w = jnp.concatenate([w1, w2], axis=0).astype(jnp.float32)   # (O, D), once
    o, d = w.shape

    # Pre-normalize rows in f32 (rsqrt + clamp matches F.normalize semantics).
    w_inv = lax.rsqrt(jnp.maximum(jnp.sum(w * w, axis=1, keepdims=True),
                                  _EPS_SQ))
    wn = w * w_inv

    cap = _vmem_capacity_bytes()
    if vmem_budget_bytes is None:
        vmem_budget_bytes = max(20 * 1024 * 1024, int(cap * 0.35))
    if vmem_limit_bytes is None:
        vmem_limit_bytes = max(32 * 1024 * 1024,
                               min(int(cap * 0.6), 96 * 1024 * 1024))

    mxu_isz = jnp.dtype(mxu_dtype).itemsize

    def tile_bytes(tm, tn):
        return (2 * tm * d * 4            # x tile, double-buffered (worst f32)
                + 2 * d * tn * mxu_isz    # pre-normalized weight tile, 2 bufs
                + 2 * tm * tn * 4         # output tile, double-buffered
                + tm * d * (4 + mxu_isz)  # f32 upcast + xn temporaries
                + tm * tn * 4)            # f32 matmul result before out cast

    tn = tn_max
    while tn > 128 and tile_bytes(tm_max, tn) > vmem_budget_bytes:
        tn //= 2
    tm_cap = tm_max
    while tm_cap > 64 and tile_bytes(tm_cap, tn) > vmem_budget_bytes:
        tm_cap //= 2

    # Clamp tn to the head size and minimize column padding for the chosen n_o.
    o128 = _round_up(o, 128)
    tn = min(tn, o128)
    n_o = _cdiv(o, tn)
    tn = _round_up(_cdiv(o, n_o), 128)
    o_pad = n_o * tn

    if o_pad != o:
        wn = jnp.pad(wn, ((0, o_pad - o), (0, 0)))   # zero rows -> zero cosine
    wn_t = jnp.asarray(wn.T, dtype=mxu_dtype)        # (D, O_pad), stored once

    sigma_arr = jnp.asarray(sigma, jnp.float32).reshape(1, 1)
    return {
        "wn_t": wn_t,              # (D, O_pad) pre-normalized, mxu dtype
        "sigma": sigma_arr,
        "out_features": o,
        "tn": tn,
        "tm_cap": tm_cap,
        "mxu_dtype": mxu_dtype,
        "vmem_limit_bytes": vmem_limit_bytes,
    }


# --------------------------------------------------------------------------
# Forward
# --------------------------------------------------------------------------
def split_cosine_forward(x, params):
    """x: (B, D) -> (B, out_features1 + out_features2)."""
    wn_t = params["wn_t"]
    sigma_arr = params["sigma"]
    o_valid = params["out_features"]
    tn = params["tn"]
    tm_cap = params["tm_cap"]
    mxu_dtype = params["mxu_dtype"]
    vmem_limit = params["vmem_limit_bytes"]

    b, d = x.shape
    o_pad = wn_t.shape[1]
    n_o = o_pad // tn
    out_dtype = x.dtype

    # Tight batch padding: at most one sublane group of waste per batch tile.
    sub = 16 if (jnp.dtype(mxu_dtype).itemsize < 4
                 or jnp.dtype(x.dtype).itemsize < 4) else 8
    n_b = _cdiv(b, tm_cap)
    tm = _round_up(_cdiv(b, n_b), sub)
    b_pad = n_b * tm
    if b_pad != b:
        x = jnp.pad(x, ((0, b_pad - b), (0, 0)))     # zero rows -> zero output

    x_isz = jnp.dtype(x.dtype).itemsize
    w_isz = jnp.dtype(wn_t.dtype).itemsize
    out_isz = jnp.dtype(out_dtype).itemsize

    # Grid-order heuristic: the inner-axis operand is re-streamed
    # outer-extent times; pick the order with less total HBM traffic.
    traffic_o_outer = (o_pad * d * w_isz + n_o * b_pad * d * x_isz
                       + b_pad * o_pad * out_isz)
    traffic_b_outer = (b_pad * d * x_isz + n_b * o_pad * d * w_isz
                       + b_pad * o_pad * out_isz)
    o_outer = traffic_o_outer <= traffic_b_outer

    # Many-class heads: x is re-read n_o times -> halve that stream via bf16
    # (norms are still computed in f32 inside the kernel).
    if (o_outer and n_o >= 4 and x.dtype == jnp.float32
            and jnp.dtype(mxu_dtype).itemsize < 4):
        x = x.astype(mxu_dtype)
        x_isz = jnp.dtype(x.dtype).itemsize
        traffic_o_outer = (o_pad * d * w_isz + n_o * b_pad * d * x_isz
                           + b_pad * o_pad * out_isz)

    if o_outer:
        grid = (n_o, n_b)
        x_spec = pl.BlockSpec((tm, d), lambda o, bt: (bt, 0))
        w_spec = pl.BlockSpec((d, tn), lambda o, bt: (0, o))
        s_spec = pl.BlockSpec((1, 1), lambda o, bt: (0, 0),
                              memory_space=pltpu.MemorySpace.SMEM)
        out_spec = pl.BlockSpec((tm, tn), lambda o, bt: (bt, o))
        bytes_accessed = traffic_o_outer
    else:
        grid = (n_b, n_o)
        x_spec = pl.BlockSpec((tm, d), lambda bt, o: (bt, 0))
        w_spec = pl.BlockSpec((d, tn), lambda bt, o: (0, o))
        s_spec = pl.BlockSpec((1, 1), lambda bt, o: (0, 0),
                              memory_space=pltpu.MemorySpace.SMEM)
        out_spec = pl.BlockSpec((tm, tn), lambda bt, o: (bt, o))
        bytes_accessed = traffic_b_outer

    out = pl.pallas_call(
        _split_cosine_kernel,
        out_shape=jax.ShapeDtypeStruct((b_pad, o_pad), out_dtype),
        grid_spec=pltpu.PrefetchScalarGridSpec(
            num_scalar_prefetch=0,
            grid=grid,
            in_specs=[x_spec, w_spec, s_spec],
            out_specs=out_spec,
        ),
        compiler_params=pltpu.CompilerParams(
            # Pure per grid point (no cross-step cache / accumulator): both
            # axes may shard across TensorCores on v7x.
            dimension_semantics=("parallel", "parallel"),
            vmem_limit_bytes=vmem_limit),
        cost_estimate=pl.CostEstimate(
            flops=2 * b_pad * o_pad * d,
            transcendentals=b_pad * n_o,
            bytes_accessed=int(bytes_accessed)),
    )(x, wn_t, sigma_arr)

    return out[:b, :o_valid]


# --------------------------------------------------------------------------
# Parameter init / pure-JAX reference (mirrors the PyTorch module)
# --------------------------------------------------------------------------
def _init_params(key, in_features, out_features1, out_features2):
    # CosineLinear.reset_parameters: uniform(-stdv, stdv), stdv = 1/sqrt(in).
    stdv = 1.0 / math.sqrt(in_features)
    k1, k2 = jax.random.split(key)
    w1 = jax.random.uniform(k1, (out_features1, in_features),
                            minval=-stdv, maxval=stdv, dtype=jnp.float32)
    w2 = jax.random.uniform(k2, (out_features2, in_features),
                            minval=-stdv, maxval=stdv, dtype=jnp.float32)
    sigma = jnp.float32(1.0)  # SplitCosineLinear fills sigma with 1
    return w1, w2, sigma


def _reference(x, w1, w2, sigma):
    def cos(xx, ww):
        xn = xx / jnp.maximum(jnp.linalg.norm(xx, axis=1, keepdims=True), _EPS)
        wn = ww / jnp.maximum(jnp.linalg.norm(ww, axis=1, keepdims=True), _EPS)
        return xn @ wn.T
    return sigma * jnp.concatenate([cos(x, w1), cos(x, w2)], axis=1)


if __name__ == "__main__":
    key = jax.random.PRNGKey(0)
    k_x, k_w = jax.random.split(key)

    batch = 4
    in_features = 32
    out_features1 = 8
    out_features2 = 8

    x = jax.random.normal(k_x, (batch, in_features), dtype=jnp.float32)
    w1, w2, sigma = _init_params(k_w, in_features, out_features1, out_features2)
    ref = _reference(x, w1, w2, sigma)

    # f32 MXU path: tight agreement with the f32 reference.
    params_f32 = prepare_split_cosine_params(w1, w2, sigma,
                                             mxu_dtype=jnp.float32)
    out_f32 = jax.block_until_ready(split_cosine_forward(x, params_f32))
    assert out_f32.shape == (batch, out_features1 + out_features2), out_f32.shape
    assert jnp.allclose(out_f32, ref, atol=1e-4, rtol=1e-4), (
        float(jnp.max(jnp.abs(out_f32 - ref))))

    # Default bf16 path (pre-normalized bf16 weights): looser tolerance.
    params_bf16 = prepare_split_cosine_params(w1, w2, sigma)
    out_bf16 = jax.block_until_ready(split_cosine_forward(x, params_bf16))
    assert out_bf16.shape == (batch, out_features1 + out_features2), out_bf16.shape
    assert jnp.allclose(out_bf16, ref, atol=2e-2, rtol=0.0), (
        float(jnp.max(jnp.abs(out_bf16 - ref))))

    print("KERNEL_OK")
</pallas_src>

<mosaic_0001>
module attributes {stable_mosaic.version = 11 : i64} {
  func.func @_split_cosine_kernel(%arg0: i32, %arg1: i32, %arg2: memref<8x32xf32, #tpu.memory_space<vmem>>, %arg3: memref<32x128xf32, #tpu.memory_space<vmem>>, %arg4: memref<1x1xf32, #tpu.memory_space<smem>>, %arg5: memref<8x128xf32, #tpu.memory_space<vmem>>) attributes {dimension_semantics = [#tpu.dimension_semantics<parallel>, #tpu.dimension_semantics<parallel>], iteration_bounds = array<i64: 1, 1>, scalar_prefetch = 0 : i64, scratch_operands = 0 : i64, tpu.core_type = #tpu.core_type<tc>, window_params = [{transform_indices = @transform_0, window_bounds = array<i64: 8, 32>}, {transform_indices = @transform_1, window_bounds = array<i64: 32, 128>}, {transform_indices = @transform_2, window_bounds = array<i64: 1, 1>}, {transform_indices = @transform_3, window_bounds = array<i64: 8, 128>}]} {
    %c0 = arith.constant 0 : index
    %c0_0 = arith.constant 0 : index
    %0 = vector.load %arg2[%c0, %c0_0] : memref<8x32xf32, #tpu.memory_space<vmem>>, vector<8x32xf32>
    %1 = arith.mulf %0, %0 : vector<8x32xf32>
    %cst = arith.constant dense<0.000000e+00> : vector<8xf32>
    %2 = vector.multi_reduction <add>, %1, %cst [1] : vector<8x32xf32> to vector<8xf32>
    %3 = vector.shape_cast %2 : vector<8xf32> to vector<8x1xf32>
    %cst_1 = arith.constant 1.000000e-24 : f32
    %4 = vector.broadcast %cst_1 : f32 to vector<8x1xf32>
    %5 = arith.maximumf %3, %4 : vector<8x1xf32>
    %6 = math.rsqrt %5 : vector<8x1xf32>
    %c0_2 = arith.constant 0 : index
    %c0_3 = arith.constant 0 : index
    %7 = memref.load %arg4[%c0_2, %c0_3] : memref<1x1xf32, #tpu.memory_space<smem>>
    %8 = vector.broadcast %7 : f32 to vector<8x1xf32>
    %9 = arith.mulf %6, %8 : vector<8x1xf32>
    %10 = vector.broadcast %9 : vector<8x1xf32> to vector<8x32xf32>
    %11 = arith.mulf %0, %10 : vector<8x32xf32>
    %c0_4 = arith.constant 0 : index
    %c0_5 = arith.constant 0 : index
    %12 = vector.load %arg3[%c0_4, %c0_5] : memref<32x128xf32, #tpu.memory_space<vmem>>, vector<32x128xf32>
    %cst_6 = arith.constant dense<0.000000e+00> : vector<8x128xf32>
    %13 = tpu.matmul %11, %12, %cst_6 {dimension_numbers = #tpu.dot_dimension_numbers<[1], [0], [0], [1], [0, 0, 1, 1], [], []>} : vector<8x32xf32>, vector<32x128xf32>, vector<8x128xf32> -> vector<8x128xf32>
    %c0_7 = arith.constant 0 : index
    %c0_8 = arith.constant 0 : index
    %14 = vector.load %arg5[%c0_7, %c0_8] : memref<8x128xf32, #tpu.memory_space<vmem>>, vector<8x128xf32>
    tpu.vector_store %arg5[%c0_7, %c0_8], %13 {strides = array<i32>} : memref<8x128xf32, #tpu.memory_space<vmem>>, vector<8x128xf32>,
    return
  }
  func.func @transform_0(%arg0: i32, %arg1: i32) -> (i32, i32) {
    %c0_i32 = arith.constant 0 : i32
    %c0_i32_0 = arith.constant 0 : i32
    return %arg1, %c0_i32 : i32, i32
  }
  func.func @transform_1(%arg0: i32, %arg1: i32) -> (i32, i32) {
    %c0_i32 = arith.constant 0 : i32
    %c0_i32_0 = arith.constant 0 : i32
    return %c0_i32, %arg0 : i32, i32
  }
  func.func @transform_2(%arg0: i32, %arg1: i32) -> (i32, i32) {
    %c0_i32 = arith.constant 0 : i32
    %c0_i32_0 = arith.constant 0 : i32
    %c0_i32_1 = arith.constant 0 : i32
    return %c0_i32, %c0_i32_0 : i32, i32
  }
  func.func @transform_3(%arg0: i32, %arg1: i32) -> (i32, i32) {
    %c0_i32 = arith.constant 0 : i32
    return %arg1, %arg0 : i32, i32
  }
}

</mosaic_0001>

<llo_original>
// kernel: tpu_custom_call.1
$region0: #{tpu_custom_call.1}
  #allocation0 [shape = 'u32[]', space=smem, size = 0x4, offset = 0x4, fixed_abs, tag = 'smem constant byte address 0x4 - core index']
  #allocation1 [shape = 'u32[144,128]{1,0:T(1,128)}', space=vmem, size = 0x12000, scoped, tag = 'internal scratch']
  #allocation2 [shape = 'f32[1,1]{1,0:T(1,128)S(6)}', space=smem, size = 0x200, scoped, tag = 'scoped memory for tpu_custom_call.1']
  %s0 = inlined_call_operand.hbm [shape: f32[8,32], index: 0, kind: input, shape index: {}]
  %s1 = inlined_call_operand.hbm [shape: f32[32,128], index: 1, kind: input, shape index: {}]
  %s2 = inlined_call_operand.<no memory space> [shape: f32[1,1], index: 2, kind: input, shape index: {}]
  %s3 = inlined_call_operand.hbm [shape: f32[8,128], index: 3, kind: output, shape index: {}]
  %s4 = sld [smem:[#allocation0]]
  $region30: #{tpu_custom_call.1} parent=0
    _
  %s6 = ssub.s32 1, %s4
  %s7 = scalar_select 0, %s6, %s4
  %8 = sst [smem:[#allocation2]] %s2
  $region1: #{tpu_custom_call.1} parent=0
    #allocation3 [shape = 'u8[4096]{0}', space=vmem, size = 0x1000, scoped, tag = 'input window, operand 0, single buffered']
    #allocation4 [shape = 's32[1]{0}', space=sflag, size = 0x4, scoped, tag = 'scoped memory for tpu_custom_call.1']
    #allocation5 [shape = 's32[1]{0}', space=sflag, size = 0x4, scoped, tag = 'scoped memory for tpu_custom_call.1']
    #allocation6 [shape = 'u8[16384]{0}', space=vmem, size = 0x4000, scoped, tag = 'input window, operand 1, single buffered']
    #allocation7 [shape = 's32[1]{0}', space=sflag, size = 0x4, scoped, tag = 'scoped memory for tpu_custom_call.1']
    #allocation8 [shape = 'u8[4096]{0}', space=vmem, size = 0x1000, scoped, tag = 'output window, operand 0, single buffered']
    %9 = vsyncpa [#allocation4], 0
    %10 = vsyncpa [#allocation7], 0
    %11 = vsyncpa [#allocation5], 0
    // Predicated region
    $region2: #{tpu_custom_call.1} parent=1 // pred_check
      _
    $region3: #{tpu_custom_call.1} parent=1 // pred_check_branch
      %13 = sbr.rel (0) target = $region5
    $region4: #{tpu_custom_call.1} parent=1 // pred_region
      %s15 = ssub.s32 128, 128
      %16 = vsyncadd [#allocation4], %s15
      %s18 = sshll.u32 [#allocation3], 4
      %s19 = int_to_ptr.vmem [resolvable:$true] %s18
      %21 = dma.hbm_to_vmem [thread:$0]  %s0, 128, %s19, [#allocation4]
    $region5: #{tpu_custom_call.1} parent=1 // pred_fallthru
      _
    // Predicated region
    $region6: #{tpu_custom_call.1} parent=1 // pred_check
      _
    $region7: #{tpu_custom_call.1} parent=1 // pred_check_branch
      %23 = sbr.rel (0) target = $region9
    $region8: #{tpu_custom_call.1} parent=1 // pred_region
      %s25 = ssub.s32 512, 512
      %26 = vsyncadd [#allocation7], %s25
      %s27 = sshll.u32 [#allocation6], 4
      %s28 = int_to_ptr.vmem [resolvable:$true] %s27
      %33 = dma.hbm_to_vmem [thread:$0]  %s1, 512, %s28, [#allocation7], 128, 128, 8
    $region9: #{tpu_custom_call.1} parent=1 // pred_fallthru
      _
    // Predicated region
    $region10: #{tpu_custom_call.1} parent=1 // pred_check
      _
    $region11: #{tpu_custom_call.1} parent=1 // pred_check_branch
      %35 = sbr.rel (0) target = $region13
    $region12: #{tpu_custom_call.1} parent=1 // pred_region
      _
    $region13: #{tpu_custom_call.1} parent=1 // pred_fallthru
      _
    // Predicated region
    $region14: #{tpu_custom_call.1} parent=1 // pred_check
      _
    $region15: #{tpu_custom_call.1} parent=1 // pred_check_branch
      %37 = sbr.rel (0) target = $region17
    $region16: #{tpu_custom_call.1} parent=1 // pred_region
      %38 = dma.done [#allocation4], 128
    $region17: #{tpu_custom_call.1} parent=1 // pred_fallthru
      _
    // Predicated region
    $region18: #{tpu_custom_call.1} parent=1 // pred_check
      _
    $region19: #{tpu_custom_call.1} parent=1 // pred_check_branch
      %40 = sbr.rel (0) target = $region21
    $region20: #{tpu_custom_call.1} parent=1 // pred_region
      %41 = dma.done [#allocation7], 512
    $region21: #{tpu_custom_call.1} parent=1 // pred_fallthru
      _
    %v42 = vld [vmem:[#allocation3] sm:$0xff]
    %v43 = vmul.f32 %v42, %v42
    %vm44 = vcmask 261120
    %v45 = vsel %vm44, %v43, 0.0
    %46 = vadd.xlane.f32.xlu0 %v45
    %v47 = vpop.xlane.xlu0 %46
    %v48 = vmax.f32 %v47, 1e-24
    %v49 = vrsqrt.pop %v48
    %s50 = sld [smem:[#allocation2]]
    %v51 = vstv %s50
    %v52 = vmul.f32 %v49, %v51
    %v53 = vmul.f32 %v42, %v52
    %v54 = vld [vmem:[#allocation6] sm:$0xff]
    %v55 = vld [vmem:[#allocation6 + $0x8] sm:$0xff]
    %v56 = vld [vmem:[#allocation6 + $0x10] sm:$0xff]
    %v57 = vld [vmem:[#allocation6 + $0x18] sm:$0xff]
    %v59 = vsel %vm44, %v53, 0
    %61 = vmatprep.subr.mxu0 0.0
    %62 = vmatpush1.msra.mxu0 %v54
    %63 = vmatprep.subr.mxu0 0.0
    %64 = vmatpush1.msra.mxu0 %v55
    %65 = vmatprep.subr.mxu0 0.0
    %66 = vmatpush1.msra.mxu0 %v56
    %67 = vmatprep.subr.mxu0 0.0
    %68 = vmatpush1.msra.mxu0 %v57
    %69 = vmatprep.subr.mxu0 0.0
    %70 = vmatpush1.msra.mxu0 0.0
    %71 = vmatprep.subr.mxu0 0.0
    %72 = vmatpush1.msra.mxu0 0.0
    %73 = vmatprep.subr.mxu0 0.0
    %74 = vmatpush1.msra.mxu0 0.0
    %75 = vmatprep.subr.mxu0 0.0
    %76 = vmatpush1.msra.mxu0 0.0
    %77 = vmatprep.subr.mxu0 0.0
    %78 = vmatpush1.msra.mxu0 0.0
    %79 = vmatprep.subr.mxu0 0.0
    %80 = vmatpush1.msra.mxu0 0.0
    %81 = vmatprep.subr.mxu0 0.0
    %82 = vmatpush1.msra.mxu0 0.0
    %83 = vmatprep.subr.mxu0 0.0
    %84 = vmatpush1.msra.mxu0 0.0
    %85 = vmatprep.subr.mxu0 0.0
    %86 = vmatpush1.msra.mxu0 0.0
    %87 = vmatprep.subr.mxu0 0.0
    %88 = vmatpush1.msra.mxu0 0.0
    %89 = vmatprep.subr.mxu0 0.0
    %90 = vmatpush1.msra.mxu0 0.0
    %91 = vmatprep.subr.mxu0 0.0
    %92 = vmatpush1.msra.mxu0 0.0
    %93 = vmatprep.subr.mxu0 0.0
    %94 = vmatpush1.msra.mxu0 0.0
    %95 = vmatprep.subr.mxu0 0.0
    %96 = vmatpush1.msra.mxu0 0.0
    %97 = vmatprep.subr.mxu0 0.0
    %98 = vmatpush1.msra.mxu0 0.0
    %99 = vmatprep.subr.mxu0 0.0
    %100 = vmatpush1.msra.mxu0 0.0
    %101 = vmatprep.subr.mxu0 0.0
    %102 = vmatpush1.msra.mxu0 0.0
    %103 = vmatprep.subr.mxu0 0.0
    %104 = vmatpush1.msra.mxu0 0.0
    %105 = vmatprep.subr.mxu0 0.0
    %106 = vmatpush1.msra.mxu0 0.0
    %107 = vmatprep.subr.mxu0 0.0
    %108 = vmatpush1.msra.mxu0 0.0
    %109 = vmatprep.subr.mxu0 0.0
    %110 = vmatpush1.msra.mxu0 0.0
    %111 = vmatprep.subr.mxu0 0.0
    %112 = vmatpush1.msra.mxu0 0.0
    %113 = vmatprep.subr.mxu0 0.0
    %114 = vmatpush1.msra.mxu0 0.0
    %115 = vmatprep.subr.mxu0 0.0
    %116 = vmatpush1.msra.mxu0 0.0
    %117 = vmatprep.subr.mxu0 0.0
    %118 = vmatpush1.msra.mxu0 0.0
    %119 = vmatprep.subr.mxu0 0.0
    %120 = vmatpush1.msra.mxu0 0.0
    %121 = vmatprep.subr.mxu0 0.0
    %122 = vmatpush1.msra.mxu0 0.0
    %123 = vmatprep.subr.mxu0 0.0
    %124 = vmatpush1.msra.mxu0 0.0
    %125 = vmatprep.mubr.f32.mxu0 0.0
    %126 = vmatmul.mubr.f32.gmra.mrb[0].mxu0 %v59
    %v127 = vpop.f32.mrb[0].mxu0
    %v128 = vadd.f32 0.0, %v127
    %v129 = vpop.f32.mrb[0].mxu0
    %130 = vdwg.mxu0
    %131 = vst [vmem:[#allocation8] sm:$0xff] %v128
    // Predicated region
    $region22: #{tpu_custom_call.1} parent=1 // pred_check
      _
    $region23: #{tpu_custom_call.1} parent=1 // pred_check_branch
      %133 = sbr.rel (0) target = $region25
    $region24: #{tpu_custom_call.1} parent=1 // pred_region
      %s135 = ssub.s32 128, 128
      %136 = vsyncadd [#allocation5], %s135
      %s138 = sshll.u32 [#allocation8], 4
      %s139 = int_to_ptr.vmem [resolvable:$true] %s138
      %141 = dma.vmem_to_hbm [thread:$0]  %s139, 128, %s3, [#allocation5]
    $region25: #{tpu_custom_call.1} parent=1 // pred_fallthru
      _
    // Predicated region
    $region26: #{tpu_custom_call.1} parent=1 // pred_check
      _
    $region27: #{tpu_custom_call.1} parent=1 // pred_check_branch
      %143 = sbr.rel (0) target = $region29
    $region28: #{tpu_custom_call.1} parent=1 // pred_region
      %144 = dma.done [#allocation5], 128
    $region29: #{tpu_custom_call.1} parent=1 // pred_fallthru
      _
    %145 = vsyncpa [#allocation4], 1
    %146 = vsyncpa [#allocation7], 1
    %147 = vsyncpa [#allocation5], 1

</llo_original>
